<compile_context>
chip_gen: v5e
topology: v5e:2x2
jax: 0.10.0
libtpu: 0.0.40
codegen_flags: <defaults>
</compile_context>

<pallas_src>
import functools
import math

import jax
import jax.numpy as jnp
from jax.experimental import pallas as pl
from jax.experimental.pallas import tpu as pltpu


# =====================  Generation-aware VMEM budget  =====================

def _detect_vmem_limit():
    """Scoped-VMEM budget: <=96 MiB on 128-MiB parts (v5e/v6e), <=48 MiB on v7x."""
    cap = None
    try:
        info = pltpu.get_tpu_info()
        cap = getattr(info, "vmem_capacity_bytes", None)
    except Exception:
        cap = None
    if not cap:
        cap = 64 * 1024 * 1024            # conservative fallback (v7x-sized VMEM)
    return min(int(cap) * 3 // 4, 96 * 1024 * 1024)


_VMEM_LIMIT = _detect_vmem_limit()
_TILE_BUDGET = int(_VMEM_LIMIT * 0.6)     # headroom for Mosaic-internal scratch


def _divisor_candidates(dim, opts):
    cs = [c for c in opts if c <= dim and dim % c == 0]
    return cs if cs else [dim]


def _select_matmul_tiles(M, N, K, out_bytes, full_n):
    """Largest (tm, tn, tk) (256-multiples preferred) whose working set fits VMEM."""
    tms = _divisor_candidates(M, (512, 256, 128))
    tns = [N] if full_n else _divisor_candidates(N, (512, 256, 128))
    tks = _divisor_candidates(K, (2048, 1024, 512, 256, 128))

    def vmem_need(tm, tn, tk):
        return (2 * tm * tk * 2            # x tile, double-buffered, bf16
                + 2 * tk * tn * 2          # w tile, double-buffered, bf16
                + 2 * tm * tn * 2          # residual tile (worst case), bf16
                + 2 * tm * tn * out_bytes  # out tile, double-buffered
                + tm * tn * 4              # f32 accumulator scratch
                + 8 * tn * 4)              # bias / LayerNorm params

    for tm in tms:                         # prioritize large tm/tn (cuts HBM re-reads)
        for tn in tns:
            for tk in tks:
                if vmem_need(tm, tn, tk) <= _TILE_BUDGET:
                    return tm, tn, tk
    return tms[-1], tns[-1], tks[-1]


# =====================  Tiled fused matmul kernel  =====================
# out = epilogue(x @ w + bias);  epilogue ∈ {identity, GELU, (+residual, LayerNorm)}

def _matmul_fused_kernel(*refs, activation, has_residual, has_ln):
    n_in = 3 + (1 if has_residual else 0) + (2 if has_ln else 0)
    x_ref, w_ref, b_ref = refs[0], refs[1], refs[2]
    pos = 3
    res_ref = None
    if has_residual:
        res_ref = refs[pos]
        pos += 1
    g_ref = beta_ref = None
    if has_ln:
        g_ref, beta_ref = refs[pos], refs[pos + 1]
        pos += 2
    out_ref, acc_ref = refs[n_in], refs[n_in + 1]

    k = pl.program_id(2)

    @pl.when(k == 0)
    def _():
        acc_ref[...] = jnp.zeros_like(acc_ref)

    acc_ref[...] += jnp.dot(x_ref[...], w_ref[...],
                            preferred_element_type=jnp.float32)

    @pl.when(k == pl.num_programs(2) - 1)
    def _():
        y = acc_ref[...] + b_ref[...].astype(jnp.float32)
        if activation == "gelu":
            # TODO(synk): HF BERT uses the exact erf GELU; tanh approximation is
            # used to guarantee Mosaic elementwise lowering (EUP tanh).
            c = jnp.float32(0.7978845608028654)  # sqrt(2/pi)
            y = 0.5 * y * (1.0 + jnp.tanh(c * (y + 0.044715 * y * y * y)))
        if has_residual:
            y = y + res_ref[...].astype(jnp.float32)
        if has_ln:
            mean = jnp.mean(y, axis=-1, keepdims=True)
            yc = y - mean
            var = jnp.mean(yc * yc, axis=-1, keepdims=True)
            y = (yc * jax.lax.rsqrt(var + 1e-12) * g_ref[...].astype(jnp.float32)
                 + beta_ref[...].astype(jnp.float32))
        out_ref[...] = y.astype(out_ref.dtype)


def matmul_fused(x, w, b, *, residual=None, ln=None, activation="none",
                 out_dtype=jnp.bfloat16):
    M, K = x.shape
    Kw, N = w.shape
    assert K == Kw
    # LayerNorm epilogue normalizes over the full feature dim -> single N tile.
    tm, tn, tk = _select_matmul_tiles(M, N, K, jnp.dtype(out_dtype).itemsize,
                                      full_n=ln is not None)

    args = [x.astype(jnp.bfloat16), w.astype(jnp.bfloat16), b]
    in_specs = [
        pl.BlockSpec((tm, tk), lambda i, j, k: (i, k)),
        pl.BlockSpec((tk, tn), lambda i, j, k: (k, j)),
        pl.BlockSpec((1, tn), lambda i, j, k: (0, j)),
    ]
    if residual is not None:
        args.append(residual)
        in_specs.append(pl.BlockSpec((tm, tn), lambda i, j, k: (i, j)))
    if ln is not None:
        g, beta = ln
        args.extend([g, beta])
        in_specs.extend([pl.BlockSpec((1, tn), lambda i, j, k: (0, j)),
                         pl.BlockSpec((1, tn), lambda i, j, k: (0, j))])

    kern = functools.partial(_matmul_fused_kernel, activation=activation,
                             has_residual=residual is not None,
                             has_ln=ln is not None)
    bytes_accessed = 2 * (M * K + K * N) + M * N * jnp.dtype(out_dtype).itemsize
    if residual is not None:
        bytes_accessed += M * N * 2
    cost = pl.CostEstimate(flops=2 * M * N * K,
                           transcendentals=(M * N if activation == "gelu" else 0),
                           bytes_accessed=int(bytes_accessed))
    # TODO(synk): on v7x/v6e sweep pipeline_mode=pl.Buffered(3) on the weight spec of
    # the FFN matmuls once tiles are large enough that the K-loop DMA gets exposed.
    return pl.pallas_call(
        kern,
        grid=(M // tm, N // tn, K // tk),
        in_specs=in_specs,
        out_specs=pl.BlockSpec((tm, tn), lambda i, j, k: (i, j)),
        out_shape=jax.ShapeDtypeStruct((M, N), out_dtype),
        scratch_shapes=[pltpu.VMEM((tm, tn), jnp.float32)],
        compiler_params=pltpu.CompilerParams(
            dimension_semantics=("parallel", "parallel", "arbitrary"),
            vmem_limit_bytes=_VMEM_LIMIT),
        cost_estimate=cost,
    )(*args)


# =====================  Row-tiled LayerNorm (embeddings)  =====================

def _layernorm_kernel(x_ref, g_ref, b_ref, o_ref):
    x = x_ref[...].astype(jnp.float32)
    mean = jnp.mean(x, axis=-1, keepdims=True)
    xc = x - mean
    var = jnp.mean(xc * xc, axis=-1, keepdims=True)
    o_ref[...] = (xc * jax.lax.rsqrt(var + 1e-12) * g_ref[...]
                  + b_ref[...]).astype(o_ref.dtype)


def layernorm(x, g, b, out_dtype=jnp.bfloat16):
    M, H = x.shape
    tm = _divisor_candidates(M, (512, 256, 128))[0]
    return pl.pallas_call(
        _layernorm_kernel,
        grid=(M // tm,),
        in_specs=[pl.BlockSpec((tm, H), lambda i: (i, 0)),
                  pl.BlockSpec((1, H), lambda i: (0, 0)),
                  pl.BlockSpec((1, H), lambda i: (0, 0))],
        out_specs=pl.BlockSpec((tm, H), lambda i: (i, 0)),
        out_shape=jax.ShapeDtypeStruct((M, H), out_dtype),
        compiler_params=pltpu.CompilerParams(
            dimension_semantics=("parallel",), vmem_limit_bytes=_VMEM_LIMIT),
    )(x, g, b)


# =====================  Attention (batch-parallel, heads split in-kernel)  ====

def _attention_kernel(qkv_ref, bias_ref, o_ref, *, heads, head_dim, hidden, scale):
    qkv = qkv_ref[0]                       # (T, 3H) bf16 block for this batch row
    bias = bias_ref[0]                     # (1, T)  f32 additive mask over keys
    # TODO(synk): when head_dim < 128 (e.g. 64), batch head pairs in one dot_general
    # for lane-dense slices; and add flash-style KV tiling for long sequences.
    for h in range(heads):                 # static loop; one head live at a time
        lo = h * head_dim
        q = qkv[:, lo:lo + head_dim]
        k = qkv[:, hidden + lo:hidden + lo + head_dim]
        v = qkv[:, 2 * hidden + lo:2 * hidden + lo + head_dim]
        s = jax.lax.dot_general(q, k, (((1,), (1,)), ((), ())),
                                preferred_element_type=jnp.float32)
        s = s * scale + bias
        s = s - jnp.max(s, axis=-1, keepdims=True)
        p = jnp.exp(s)
        p = p / jnp.sum(p, axis=-1, keepdims=True)      # exact divide (parity)
        ctx = jnp.dot(p.astype(qkv.dtype), v, preferred_element_type=jnp.float32)
        o_ref[0, :, lo:lo + head_dim] = ctx.astype(o_ref.dtype)   # direct slab store


def attention(qkv, mask_bias, *, heads, head_dim, hidden, scale):
    B, T, threeH = qkv.shape
    kern = functools.partial(_attention_kernel, heads=heads, head_dim=head_dim,
                             hidden=hidden, scale=scale)
    cost = pl.CostEstimate(
        flops=4 * B * heads * T * T * head_dim,
        transcendentals=B * heads * T * T,
        bytes_accessed=int(qkv.size * 2 + B * T * hidden * 2 + mask_bias.size * 4))
    return pl.pallas_call(
        kern,
        grid=(B,),
        in_specs=[pl.BlockSpec((1, T, threeH), lambda b: (b, 0, 0)),
                  pl.BlockSpec((1, 1, T), lambda b: (b, 0, 0))],
        out_specs=pl.BlockSpec((1, T, hidden), lambda b: (b, 0, 0)),
        out_shape=jax.ShapeDtypeStruct((B, T, hidden), jnp.bfloat16),
        compiler_params=pltpu.CompilerParams(
            dimension_semantics=("parallel",), vmem_limit_bytes=_VMEM_LIMIT),
        cost_estimate=cost,
    )(qkv, mask_bias)


# =====================  BiGRU (pooled timestep only)  =====================
# Forward gates streamed from HBM in double-buffered chunks; backward direction is
# exactly one cell step on x[T-1] (what output[:, -1, Hg:] of a PyTorch BiGRU holds).

def _gru_chunk_size(T, Bp, Hg):
    per_step_bytes = Bp * 3 * Hg * 2               # bf16 gate activations / timestep
    cap = max(1, (1 << 20) // max(per_step_bytes, 1))   # <=1 MiB per DMA buffer
    if T > 1:
        cap = min(cap, max(1, T // 2))             # >=2 chunks so prefetch overlaps
    cap = min(cap, T)
    for d in range(cap, 0, -1):
        if T % d == 0:
            return d
    return 1


def _bigru_pooled_kernel(gi_hbm, gib_ref, whf_ref, bhf_ref, whb_ref, bhb_ref,
                         out_ref, buf, sem, h_ref, *, seq_len, chunk, hidden, batch):
    Hg = hidden
    nchunks = seq_len // chunk
    whf, bhf = whf_ref[...], bhf_ref[...]
    whb, bhb = whb_ref[...], bhb_ref[...]

    def cell(gi_t, h, wh, bh):                     # PyTorch gate order r, z, n
        gi_t = gi_t.astype(jnp.float32)
        gh = jnp.dot(h, wh, preferred_element_type=jnp.float32) + bh
        r = jax.nn.sigmoid(gi_t[:, 0:Hg] + gh[:, 0:Hg])
        z = jax.nn.sigmoid(gi_t[:, Hg:2 * Hg] + gh[:, Hg:2 * Hg])
        n = jnp.tanh(gi_t[:, 2 * Hg:3 * Hg] + r * gh[:, 2 * Hg:3 * Hg])
        return (1.0 - z) * n + z * h

    def fetch(c, slot):
        pltpu.make_async_copy(
            gi_hbm.at[:, pl.ds(c * chunk, chunk), :],
            buf.at[slot], sem.at[slot]).start()

    fetch(0, 0)                                    # prime the pipeline
    h_ref[...] = jnp.zeros_like(h_ref)

    @pl.loop(0, nchunks)
    def _(c):
        slot = c & 1
        pltpu.make_async_copy(gi_hbm.at[:, pl.ds(0, chunk), :],
                              buf.at[slot], sem.at[slot]).wait()

        @pl.when(c + 1 < nchunks)
        def _():
            fetch(c + 1, 1 - slot)                 # prefetch next chunk

        chunk_view = buf.at[slot]                  # (batch, chunk, 3Hg) bf16 view
        h = h_ref[...]
        for ti in range(chunk):                    # static unroll (LLO visibility)
            h = cell(chunk_view[:, ti, :], h, whf, bhf)
        h_ref[...] = h

    h_bwd = cell(gib_ref[...], jnp.zeros((batch, Hg), jnp.float32), whb, bhb)
    out_ref[...] = jnp.concatenate([h_ref[...], h_bwd], axis=-1).astype(out_ref.dtype)


def bigru_pooled(gi_fwd, gi_bwd_last, whf, bhf, whb, bhb, hidden):
    Bp, T, _ = gi_fwd.shape
    chunk = _gru_chunk_size(T, Bp, hidden)
    kern = functools.partial(_bigru_pooled_kernel, seq_len=T, chunk=chunk,
                             hidden=hidden, batch=Bp)
    full = lambda s: pl.BlockSpec(tuple(s), lambda i: (0,) * len(s))
    return pl.pallas_call(
        kern,
        grid=(1,),
        in_specs=[pl.BlockSpec(memory_space=pl.ANY),      # gate activations stay in HBM
                  full(gi_bwd_last.shape), full(whf.shape), full(bhf.shape),
                  full(whb.shape), full(bhb.shape)],
        out_specs=full((Bp, 2 * hidden)),
        out_shape=jax.ShapeDtypeStruct((Bp, 2 * hidden), jnp.float32),
        scratch_shapes=[pltpu.VMEM((2, Bp, chunk, 3 * hidden), gi_fwd.dtype),
                        pltpu.SemaphoreType.DMA((2,)),
                        pltpu.VMEM((Bp, hidden), jnp.float32)],
        compiler_params=pltpu.CompilerParams(
            dimension_semantics=("arbitrary",), vmem_limit_bytes=_VMEM_LIMIT),
    )(gi_fwd, gi_bwd_last, whf, bhf, whb, bhb)


# =====================  Model forward  =====================

def bert_bigru_forward(params, cfg, input_ids, attention_mask):
    B, T = input_ids.shape
    H, Hn = cfg["hidden"], cfg["heads"]
    Dh = H // Hn
    Hg = cfg["gru_hidden"]

    # ---- BERT embeddings (table gather stays in XLA; LayerNorm in Pallas) ----
    emb = (params["word_emb"][input_ids]
           + params["pos_emb"][None, :T, :]
           + params["type_emb"][0][None, None, :])          # token_type_ids == 0
    x = layernorm(emb.reshape(B * T, H), params["emb_ln_g"], params["emb_ln_b"])

    # additive attention-mask bias, (B, 1, T)
    mask_bias = ((1.0 - attention_mask.astype(jnp.float32)) * -10000.0)[:, None, :]
    scale = 1.0 / math.sqrt(Dh)

    # ---- BERT encoder layers: 4 pallas_calls per layer ----
    for lp in params["layers"]:
        qkv = matmul_fused(x, lp["w_qkv"], lp["b_qkv"])                    # (B*T, 3H)
        ctx = attention(qkv.reshape(B, T, 3 * H), mask_bias,
                        heads=Hn, head_dim=Dh, hidden=H, scale=scale)      # (B, T, H)
        x = matmul_fused(ctx.reshape(B * T, H), lp["wo"], lp["bo"],
                         residual=x, ln=(lp["ln1_g"], lp["ln1_b"]))        # proj+res+LN
        ff = matmul_fused(x, lp["w1"], lp["b1"], activation="gelu")        # FFN up+GELU
        x = matmul_fused(ff, lp["w2"], lp["b2"],
                         residual=x, ln=(lp["ln2_g"], lp["ln2_b"]))        # FFN dn+res+LN

    # ---- BiGRU input projection: forward gates for all timesteps (bf16, MXU), ----
    # ---- backward gates only for the last timestep (tiny XLA matmul).        ----
    gi_fwd = matmul_fused(x, params["gru_wi_fwd"], params["gru_bi_fwd"])   # (B*T,3Hg) bf16
    gi_fwd = gi_fwd.reshape(B, T, 3 * Hg)
    x_last = x.reshape(B, T, H)[:, T - 1, :].astype(jnp.float32)
    gi_bwd_last = x_last @ params["gru_wi_bwd"].astype(jnp.float32) + params["gru_bi_bwd"]

    Bp = ((B + 7) // 8) * 8                      # sublane-pad the recurrence batch
    if Bp != B:
        gi_fwd = jnp.pad(gi_fwd, ((0, Bp - B), (0, 0), (0, 0)))
        gi_bwd_last = jnp.pad(gi_bwd_last, ((0, Bp - B), (0, 0)))

    pooled = bigru_pooled(gi_fwd, gi_bwd_last,
                          params["gru_whf"], params["gru_bhf"],
                          params["gru_whb"], params["gru_bhb"], Hg)[:B]    # (B, 2Hg)

    # dropout(p=0.3) is identity at inference; num_labels-wide matmul stays in XLA
    # (a 3-lane Pallas output would be an entirely masked store).
    logits = pooled @ params["clf_w"].astype(jnp.float32) + params["clf_b"]
    return logits


# =====================  Deterministic parameter init  =====================

def init_params(key, cfg):
    H, L, I = cfg["hidden"], cfg["layers"], cfg["ffn"]
    Hg, V, P, C = cfg["gru_hidden"], cfg["vocab"], cfg["max_pos"], cfg["num_labels"]
    keys = iter(jax.random.split(key, 256))

    def nrm(shape, dtype=jnp.bfloat16):
        return (0.02 * jax.random.normal(next(keys), shape, jnp.float32)).astype(dtype)

    params = dict(
        word_emb=nrm((V, H), jnp.float32),
        pos_emb=nrm((P, H), jnp.float32),
        type_emb=nrm((2, H), jnp.float32),
        emb_ln_g=jnp.ones((1, H), jnp.float32),
        emb_ln_b=jnp.zeros((1, H), jnp.float32),
        layers=[],
        # GRU input projections, gate order (r, z, n)
        gru_wi_fwd=nrm((H, 3 * Hg)),
        gru_bi_fwd=jnp.zeros((1, 3 * Hg), jnp.float32),
        gru_wi_bwd=nrm((H, 3 * Hg)),
        gru_bi_bwd=jnp.zeros((1, 3 * Hg), jnp.float32),
        gru_whf=nrm((Hg, 3 * Hg), jnp.float32),
        gru_bhf=jnp.zeros((1, 3 * Hg), jnp.float32),
        gru_whb=nrm((Hg, 3 * Hg), jnp.float32),
        gru_bhb=jnp.zeros((1, 3 * Hg), jnp.float32),
        clf_w=nrm((2 * Hg, C)),
        clf_b=jnp.zeros((1, C), jnp.float32),
    )
    for _ in range(L):
        params["layers"].append(dict(
            w_qkv=nrm((H, 3 * H)), b_qkv=jnp.zeros((1, 3 * H), jnp.float32),
            wo=nrm((H, H)), bo=jnp.zeros((1, H), jnp.float32),
            ln1_g=jnp.ones((1, H), jnp.float32), ln1_b=jnp.zeros((1, H), jnp.float32),
            w1=nrm((H, I)), b1=jnp.zeros((1, I), jnp.float32),
            w2=nrm((I, H)), b2=jnp.zeros((1, H), jnp.float32),
            ln2_g=jnp.ones((1, H), jnp.float32), ln2_b=jnp.zeros((1, H), jnp.float32),
        ))
    return params


# =====================  Main  =====================

if __name__ == "__main__":
    cfg = dict(vocab=100, hidden=32, heads=4, layers=2, ffn=64,
               max_pos=16, gru_hidden=16, num_labels=3)

    key = jax.random.PRNGKey(0)
    pkey, idkey = jax.random.split(key)
    params = init_params(pkey, cfg)

    B, T = 2, 8
    input_ids = jax.random.randint(idkey, (B, T), 0, cfg["vocab"], dtype=jnp.int32)
    attention_mask = jnp.ones((B, T), jnp.int32)

    logits = bert_bigru_forward(params, cfg, input_ids, attention_mask)
    logits = jax.block_until_ready(logits)
    assert logits.shape == (B, cfg["num_labels"]), logits.shape
    print("KERNEL_OK")
</pallas_src>

<mosaic_0001>
module attributes {stable_mosaic.version = 11 : i64} {
  func.func @_layernorm_kernel(%arg0: i32, %arg1: memref<16x32xf32, #tpu.memory_space<vmem>>, %arg2: memref<1x32xf32, #tpu.memory_space<vmem>>, %arg3: memref<1x32xf32, #tpu.memory_space<vmem>>, %arg4: memref<16x32xbf16, #tpu.memory_space<vmem>>) attributes {dimension_semantics = [#tpu.dimension_semantics<parallel>], iteration_bounds = array<i64: 1>, scalar_prefetch = 0 : i64, scratch_operands = 0 : i64, tpu.core_type = #tpu.core_type<tc>, window_params = [{transform_indices = @transform_0, window_bounds = array<i64: 16, 32>}, {pipeline_mode = #tpu.pipeline_mode<synchronous>, transform_indices = @transform_1, window_bounds = array<i64: 1, 32>}, {pipeline_mode = #tpu.pipeline_mode<synchronous>, transform_indices = @transform_2, window_bounds = array<i64: 1, 32>}, {transform_indices = @transform_3, window_bounds = array<i64: 16, 32>}]} {
    %c0 = arith.constant 0 : index
    %c0_0 = arith.constant 0 : index
    %0 = vector.load %arg1[%c0, %c0_0] : memref<16x32xf32, #tpu.memory_space<vmem>>, vector<16x32xf32>
    %cst = arith.constant dense<0.000000e+00> : vector<16xf32>
    %1 = vector.multi_reduction <add>, %0, %cst [1] : vector<16x32xf32> to vector<16xf32>
    %2 = vector.shape_cast %1 : vector<16xf32> to vector<16x1xf32>
    %cst_1 = arith.constant 3.200000e+01 : f32
    %3 = vector.broadcast %cst_1 : f32 to vector<16x1xf32>
    %4 = arith.divf %2, %3 : vector<16x1xf32>
    %5 = vector.broadcast %4 : vector<16x1xf32> to vector<16x32xf32>
    %6 = arith.subf %0, %5 : vector<16x32xf32>
    %7 = arith.mulf %6, %6 : vector<16x32xf32>
    %cst_2 = arith.constant dense<0.000000e+00> : vector<16xf32>
    %8 = vector.multi_reduction <add>, %7, %cst_2 [1] : vector<16x32xf32> to vector<16xf32>
    %9 = vector.shape_cast %8 : vector<16xf32> to vector<16x1xf32>
    %cst_3 = arith.constant 3.200000e+01 : f32
    %10 = vector.broadcast %cst_3 : f32 to vector<16x1xf32>
    %11 = arith.divf %9, %10 : vector<16x1xf32>
    %cst_4 = arith.constant 9.99999996E-13 : f32
    %12 = vector.broadcast %cst_4 : f32 to vector<16x1xf32>
    %13 = arith.addf %11, %12 : vector<16x1xf32>
    %14 = math.rsqrt %13 : vector<16x1xf32>
    %15 = vector.broadcast %14 : vector<16x1xf32> to vector<16x32xf32>
    %16 = arith.mulf %6, %15 : vector<16x32xf32>
    %c0_5 = arith.constant 0 : index
    %c0_6 = arith.constant 0 : index
    %17 = vector.load %arg2[%c0_5, %c0_6] : memref<1x32xf32, #tpu.memory_space<vmem>>, vector<1x32xf32>
    %18 = vector.broadcast %17 : vector<1x32xf32> to vector<16x32xf32>
    %19 = arith.mulf %16, %18 : vector<16x32xf32>
    %c0_7 = arith.constant 0 : index
    %c0_8 = arith.constant 0 : index
    %20 = vector.load %arg3[%c0_7, %c0_8] : memref<1x32xf32, #tpu.memory_space<vmem>>, vector<1x32xf32>
    %21 = vector.broadcast %20 : vector<1x32xf32> to vector<16x32xf32>
    %22 = arith.addf %19, %21 : vector<16x32xf32>
    %23 = arith.truncf %22 : vector<16x32xf32> to vector<16x32xbf16>
    %c0_9 = arith.constant 0 : index
    %c0_10 = arith.constant 0 : index
    %24 = vector.load %arg4[%c0_9, %c0_10] : memref<16x32xbf16, #tpu.memory_space<vmem>>, vector<16x32xbf16>
    tpu.vector_store %arg4[%c0_9, %c0_10], %23 {strides = array<i32>} : memref<16x32xbf16, #tpu.memory_space<vmem>>, vector<16x32xbf16>,
    return
  }
  func.func @transform_0(%arg0: i32) -> (i32, i32) {
    %c0_i32 = arith.constant 0 : i32
    %c0_i32_0 = arith.constant 0 : i32
    return %arg0, %c0_i32 : i32, i32
  }
  func.func @transform_1(%arg0: i32) -> (i32, i32) {
    %c0_i32 = arith.constant 0 : i32
    %c0_i32_0 = arith.constant 0 : i32
    %c0_i32_1 = arith.constant 0 : i32
    return %c0_i32, %c0_i32_0 : i32, i32
  }
  func.func @transform_2(%arg0: i32) -> (i32, i32) {
    %c0_i32 = arith.constant 0 : i32
    %c0_i32_0 = arith.constant 0 : i32
    %c0_i32_1 = arith.constant 0 : i32
    return %c0_i32, %c0_i32_0 : i32, i32
  }
  func.func @transform_3(%arg0: i32) -> (i32, i32) {
    %c0_i32 = arith.constant 0 : i32
    %c0_i32_0 = arith.constant 0 : i32
    return %arg0, %c0_i32 : i32, i32
  }
}

</mosaic_0001>

<llo_original>
// kernel: tpu_custom_call.1
$region0: #{tpu_custom_call.1}
  #allocation0 [shape = 'u32[]', space=smem, size = 0x4, offset = 0x4, fixed_abs, tag = 'smem constant byte address 0x4 - core index']
  #allocation1 [shape = 'u32[72,128]{1,0:T(1,128)}', space=vmem, size = 0x9000, scoped, tag = 'internal scratch']
  %s0 = inlined_call_operand.hbm [shape: f32[16,32], index: 0, kind: input, shape index: {}]
  %s1 = inlined_call_operand.hbm [shape: f32[1,32], index: 1, kind: input, shape index: {}]
  %s2 = inlined_call_operand.vmem [shape: f32[1,32], index: 2, kind: input, shape index: {}]
  %s3 = inlined_call_operand.hbm [shape: bf16[16,32], index: 3, kind: output, shape index: {}]
  %s4 = sld [smem:[#allocation0]]
  $region30: #{tpu_custom_call.1} parent=0
    _
  %s6 = ssub.s32 1, %s4
  %s7 = scalar_select 0, %s6, %s4
  $region1: #{tpu_custom_call.1} parent=0
    #allocation2 [shape = 'u8[8192]{0}', space=vmem, size = 0x2000, scoped, tag = 'input window, operand 0, single buffered']
    #allocation3 [shape = 's32[1]{0}', space=sflag, size = 0x4, scoped, tag = 'scoped memory for tpu_custom_call.1']
    #allocation4 [shape = 's32[1]{0}', space=sflag, size = 0x4, scoped, tag = 'scoped memory for tpu_custom_call.1']
    #allocation5 [shape = 'u8[512]{0}', space=vmem, size = 0x400, scoped, tag = 'input window, operand 1, single buffered']
    #allocation6 [shape = 's32[1]{0}', space=sflag, size = 0x4, scoped, tag = 'scoped memory for tpu_custom_call.1']
    #allocation7 [shape = 'u8[4096]{0}', space=vmem, size = 0x1000, scoped, tag = 'output window, operand 0, single buffered']
    %8 = vsyncpa [#allocation3], 0
    %9 = vsyncpa [#allocation6], 0
    %10 = vsyncpa [#allocation4], 0
    // Predicated region
    $region2: #{tpu_custom_call.1} parent=1 // pred_check
      _
    $region3: #{tpu_custom_call.1} parent=1 // pred_check_branch
      %12 = sbr.rel (0) target = $region5
    $region4: #{tpu_custom_call.1} parent=1 // pred_region
      %14 = vsyncadd [#allocation3], 0
      %s15 = sshll.u32 %s0, 4
      %s16 = int_to_ptr.hbm [resolvable:$true] %s15
      %s17 = sshll.u32 [#allocation2], 4
      %s18 = int_to_ptr.vmem [resolvable:$true] %s17
      %23 = dma.hbm_to_vmem [thread:$0]  %s16, 256, %s18, [#allocation3], 128, 128, 8
    $region5: #{tpu_custom_call.1} parent=1 // pred_fallthru
      _
    // Predicated region
    $region6: #{tpu_custom_call.1} parent=1 // pred_check
      _
    $region7: #{tpu_custom_call.1} parent=1 // pred_check_branch
      %25 = sbr.rel (0) target = $region9
    $region8: #{tpu_custom_call.1} parent=1 // pred_region
      %27 = vsyncadd [#allocation6], 0
      %s29 = sshll.u32 %s1, 4
      %s30 = int_to_ptr.hbm [resolvable:$true] %s29
      %s31 = sshll.u32 [#allocation5], 4
      %s32 = int_to_ptr.vmem [resolvable:$true] %s31
      %34 = dma.hbm_to_vmem [thread:$0]  %s30, 16, %s32, [#allocation6]
    $region9: #{tpu_custom_call.1} parent=1 // pred_fallthru
      _
    // Predicated region
    $region10: #{tpu_custom_call.1} parent=1 // pred_check
      _
    $region11: #{tpu_custom_call.1} parent=1 // pred_check_branch
      %36 = sbr.rel (0) target = $region13
    $region12: #{tpu_custom_call.1} parent=1 // pred_region
      _
    $region13: #{tpu_custom_call.1} parent=1 // pred_fallthru
      _
    // Predicated region
    $region14: #{tpu_custom_call.1} parent=1 // pred_check
      _
    $region15: #{tpu_custom_call.1} parent=1 // pred_check_branch
      %38 = sbr.rel (0) target = $region17
    $region16: #{tpu_custom_call.1} parent=1 // pred_region
      %40 = dma.done [#allocation3], 256
    $region17: #{tpu_custom_call.1} parent=1 // pred_fallthru
      _
    // Predicated region
    $region18: #{tpu_custom_call.1} parent=1 // pred_check
      _
    $region19: #{tpu_custom_call.1} parent=1 // pred_check_branch
      %42 = sbr.rel (0) target = $region21
    $region20: #{tpu_custom_call.1} parent=1 // pred_region
      %44 = dma.done [#allocation6], 16
    $region21: #{tpu_custom_call.1} parent=1 // pred_fallthru
      _
    %v45 = vld [vmem:[#allocation2] sm:$0xff]
    %v46 = vld [vmem:[#allocation2 + $0x8] sm:$0xff]
    %vm47 = vcmask 261120
    %v48 = vsel %vm47, %v45, 0.0
    %49 = vadd.xlane.f32.xlu0 %v48
    %v50 = vpop.xlane.xlu0 %49
    %v51 = vsel %vm47, %v46, 0.0
    %52 = vadd.xlane.f32.xlu0 %v51
    %v53 = vpop.xlane.xlu0 %52
    %v54 = vrcp.pop 32.0
    %v55 = vmul.f32 32.0, %v54
    %v56 = vsub.f32 1.0, %v55
    %v57 = vmul.f32 %v54, %v56
    %v58 = vadd.f32 %v54, %v57
    %vm59 = vweird.f32 %v54
    %v60 = vsel %vm59, %v54, %v58
    %v61 = vmul.f32 %v50, %v60
    %v62 = vmul.f32 %v53, %v60
    %v63 = vsub.f32 %v45, %v61
    %v64 = vsub.f32 %v46, %v62
    %v65 = vmul.f32 %v63, %v63
    %v66 = vmul.f32 %v64, %v64
    %v67 = vsel %vm47, %v65, 0.0
    %68 = vadd.xlane.f32.xlu0 %v67
    %v69 = vpop.xlane.xlu0 %68
    %v70 = vsel %vm47, %v66, 0.0
    %71 = vadd.xlane.f32.xlu0 %v70
    %v72 = vpop.xlane.xlu0 %71
    %v73 = vmul.f32 %v69, %v60
    %v74 = vmul.f32 %v72, %v60
    %v75 = vadd.f32 %v73, 1e-12
    %v76 = vadd.f32 %v74, 1e-12
    %v77 = vrsqrt.pop %v75
    %v78 = vmul.f32 %v77, %v75
    %v79 = vmul.f32 %v78, %v77
    %v80 = vmul.f32 0.5, %v79
    %v81 = vsub.f32 1.5, %v80
    %v82 = vmul.f32 %v77, %v81
    %vm83 = vweird.f32 %v75
    %vm84 = vweird.f32 %v77
    %vm85 = vmor %vm83, %vm84
    %v86 = vsel %vm85, %v77, %v82
    %v87 = vrsqrt.pop %v76
    %v88 = vmul.f32 %v87, %v76
    %v89 = vmul.f32 %v88, %v87
    %v90 = vmul.f32 0.5, %v89
    %v91 = vsub.f32 1.5, %v90
    %v92 = vmul.f32 %v87, %v91
    %vm93 = vweird.f32 %v76
    %vm94 = vweird.f32 %v87
    %vm95 = vmor %vm93, %vm94
    %v96 = vsel %vm95, %v87, %v92
    %v97 = vmul.f32 %v63, %v86
    %v98 = vmul.f32 %v64, %v96
    %v99 = vld [vmem:[#allocation5] sm:$0x1]
    %v101 = vperm.slane %v99, 0
    %v103 = vmul.f32 %v97, %v101
    %v104 = vmul.f32 %v98, %v101
    %v105 = vld [vmem:[%s2] sm:$0x1]
    %v107 = vperm.slane %v105, 0
    %v109 = vadd.f32 %v103, %v107
    %v110 = vadd.f32 %v104, %v107
    %v111 = vpack.c.bf16 %v109, %v109
    %v112 = vpack.c.bf16 %v110, %v110
    %vm113 = vcmask 257024
    %114 = vst.msk [vmem:[#allocation7] sm:$0xf] %vm113, %v111
    %115 = vst.msk [vmem:[#allocation7 + $0x4] sm:$0xf] %vm113, %v112
    // Predicated region
    $region22: #{tpu_custom_call.1} parent=1 // pred_check
      _
    $region23: #{tpu_custom_call.1} parent=1 // pred_check_branch
      %117 = sbr.rel (0) target = $region25
    $region24: #{tpu_custom_call.1} parent=1 // pred_region
      %119 = vsyncadd [#allocation4], 0
      %s120 = sshll.u32 [#allocation7], 4
      %s121 = int_to_ptr.vmem [resolvable:$true] %s120
      %s122 = sshll.u32 %s3, 4
      %s123 = int_to_ptr.hbm [resolvable:$true] %s122
      %128 = dma.vmem_to_hbm [thread:$0]  %s121, 128, %s123, [#allocation4], 64, 64, 4
    $region25: #{tpu_custom_call.1} parent=1 // pred_fallthru
      _
    // Predicated region
    $region26: #{tpu_custom_call.1} parent=1 // pred_check
      _
    $region27: #{tpu_custom_call.1} parent=1 // pred_check_branch
      %130 = sbr.rel (0) target = $region29
    $region28: #{tpu_custom_call.1} parent=1 // pred_region
      %132 = dma.done [#allocation4], 128
    $region29: #{tpu_custom_call.1} parent=1 // pred_fallthru
      _
    %133 = vsyncpa [#allocation3], 1
    %134 = vsyncpa [#allocation6], 1
    %135 = vsyncpa [#allocation4], 1

</llo_original>
